<compile_context>
chip_gen: v6e
topology: v6e:2x2x1
jax: 0.10.0
libtpu: 0.0.40
codegen_flags: <defaults>
</compile_context>

<pallas_src>
import jax
import jax.numpy as jnp
from jax.experimental import pallas as pl
from jax.experimental.pallas import tpu as pltpu


def _fused_decoder_kernel(sb_ref, pp_ref, wsb_ref, wpp_ref, b_ref, o_ref):
    # sb_ref:  (tm, K_sb) f32      wsb_ref: (K_sb, NOUT) bf16
    # pp_ref:  (tm, K_pp) f32      wpp_ref: (K_pp, NOUT) bf16
    # b_ref:   (1, NOUT)  f32      o_ref:   (tm, NOUT)   f32
    sb = sb_ref[...].astype(jnp.bfloat16)
    pp = pp_ref[...].astype(jnp.bfloat16)
    acc = jnp.dot(sb, wsb_ref[...], preferred_element_type=jnp.float32)
    acc = acc + jnp.dot(pp, wpp_ref[...], preferred_element_type=jnp.float32)
    o_ref[...] = acc + b_ref[...]


def _choose_tm(n):
    """Pick a batch tile: as large as possible (amortize ~0.35us/step overhead)
    while keeping >=2 grid steps (v7x megacore) and modest padding waste."""
    for tm in (1024, 512, 256, 128, 64, 32, 16, 8):
        if 2 * tm <= n and (-n) % tm <= max(n // 8, 0):
            return tm
    return 8


def fused_basis_decoder(sb, pp, w_sb_pad, w_pp_pad, b_pad):
    """Returns the (N, NOUT_pad) lane-dense output slab (still batch-padded rows
    sliced off)."""
    n, k_sb = sb.shape
    n2, k_pp = pp.shape
    assert n == n2
    nout_pad = w_sb_pad.shape[1]
    assert w_pp_pad.shape[1] == nout_pad and b_pad.shape == (1, nout_pad)

    tm = _choose_tm(n)
    n_pad = pl.cdiv(n, tm) * tm
    if n_pad != n:
        sb = jnp.pad(sb, ((0, n_pad - n), (0, 0)))
        pp = jnp.pad(pp, ((0, n_pad - n), (0, 0)))

    grid = (n_pad // tm,)

    # Advisory cost estimate for XLA's scheduler.
    flops = 2 * n_pad * (k_sb + k_pp) * nout_pad
    bytes_accessed = (
        n_pad * (k_sb + k_pp) * 4          # activation reads (f32)
        + n_pad * nout_pad * 4             # output writes (f32)
        + (k_sb + k_pp) * nout_pad * 2     # bf16 weights
        + nout_pad * 4                     # bias
    )

    # Explicit VMEM budget (double-buffered tiles + resident weights); only
    # override the scoped default when we actually need more than ~12 MiB.
    vmem_bytes = (
        2 * tm * (k_sb + k_pp) * 4
        + 2 * tm * nout_pad * 4
        + 2 * (k_sb + k_pp) * nout_pad * 2
        + 2 * nout_pad * 4
    )
    vmem_limit = None
    if vmem_bytes > 12 * 1024 * 1024:
        vmem_limit = min(vmem_bytes + (4 << 20), 60 << 20)  # stay within v7x's 64 MiB

    out = pl.pallas_call(
        _fused_decoder_kernel,
        out_shape=jax.ShapeDtypeStruct((n_pad, nout_pad), jnp.float32),
        grid_spec=pltpu.PrefetchScalarGridSpec(
            num_scalar_prefetch=0,
            grid=grid,
            in_specs=[
                pl.BlockSpec((tm, k_sb), lambda i: (i, 0)),        # sb activations tile
                pl.BlockSpec((tm, k_pp), lambda i: (i, 0)),        # pp activations tile
                pl.BlockSpec((k_sb, nout_pad), lambda i: (0, 0)),  # resident sb weights
                pl.BlockSpec((k_pp, nout_pad), lambda i: (0, 0)),  # resident pp weights
                pl.BlockSpec((1, nout_pad), lambda i: (0, 0)),     # fused bias row
            ],
            out_specs=pl.BlockSpec((tm, nout_pad), lambda i: (i, 0)),
        ),
        compiler_params=pltpu.CompilerParams(
            dimension_semantics=("parallel",),
            vmem_limit_bytes=vmem_limit,
        ),
        cost_estimate=pl.CostEstimate(
            flops=flops, transcendentals=0, bytes_accessed=bytes_accessed
        ),
    )(sb, pp, w_sb_pad, w_pp_pad, b_pad)

    return out[:n]


class BasisDecoderPallas:
    """JAX/Pallas port of BasisDecoder for depth <= 1 (plain Linear heads)."""

    def __init__(self, sb_input_size, pp_input_size, sb_output_size, depth, width,
                 key=jax.random.PRNGKey(0)):
        assert depth <= 1, "ResidMLP branch not implemented (see TODO above)"
        k1, k2, k3, k4 = jax.random.split(key, 4)
        # PyTorch nn.Linear stores weight as (out, in); init ~ U(-1/sqrt(in), 1/sqrt(in)).
        sb_bound = 1.0 / (sb_input_size ** 0.5)
        pp_bound = 1.0 / (pp_input_size ** 0.5)
        w_sb = jax.random.uniform(k1, (sb_output_size, sb_input_size),
                                  jnp.float32, -sb_bound, sb_bound)
        b_sb = jax.random.uniform(k2, (sb_output_size,), jnp.float32, -sb_bound, sb_bound)
        w_pp = jax.random.uniform(k3, (2, pp_input_size),
                                  jnp.float32, -pp_bound, pp_bound)
        b_pp = jax.random.uniform(k4, (2,), jnp.float32, -pp_bound, pp_bound)

        self.sb_output_size = sb_output_size
        nout = sb_output_size + 2
        self.nout_pad = ((nout + 127) // 128) * 128

        # f32 reference copies (pre-transposed to (in, out)).
        self.w_sb_t = jnp.asarray(w_sb.T)
        self.b_sb = jnp.asarray(b_sb)[None, :]
        self.w_pp_t = jnp.asarray(w_pp.T)
        self.b_pp = jnp.asarray(b_pp)[None, :]

        # Lane-dense fused parameters: weights in bf16 for the MXU feed,
        # zero-padded to a 128-wide output slab; bias stays f32.
        w_sb_pad = jnp.zeros((sb_input_size, self.nout_pad), jnp.bfloat16)
        w_sb_pad = w_sb_pad.at[:, :sb_output_size].set(self.w_sb_t.astype(jnp.bfloat16))
        w_pp_pad = jnp.zeros((pp_input_size, self.nout_pad), jnp.bfloat16)
        w_pp_pad = w_pp_pad.at[:, sb_output_size:sb_output_size + 2].set(
            self.w_pp_t.astype(jnp.bfloat16))
        b_pad = jnp.zeros((1, self.nout_pad), jnp.float32)
        b_pad = b_pad.at[:, :sb_output_size].set(self.b_sb)
        b_pad = b_pad.at[:, sb_output_size:sb_output_size + 2].set(self.b_pp)

        self.w_sb_pad = w_sb_pad
        self.w_pp_pad = w_pp_pad
        self.b_pad = b_pad

    def __call__(self, sb, pp):
        out = fused_basis_decoder(sb, pp, self.w_sb_pad, self.w_pp_pad, self.b_pad)
        sb_out = out[:, :self.sb_output_size]
        pp_out = out[:, self.sb_output_size:self.sb_output_size + 2]
        return sb_out, pp_out


if __name__ == "__main__":
    # Small, deterministic example consistent with the module's forward:
    # sb: (batch, sb_input_size), pp: (batch, pp_input_size)
    batch = 16
    sb_input_size = 32
    pp_input_size = 16
    sb_output_size = 64
    depth = 1
    width = 4  # unused for depth <= 1

    key = jax.random.PRNGKey(0)
    k_sb, k_pp, k_params = jax.random.split(key, 3)
    sb = jax.random.normal(k_sb, (batch, sb_input_size), jnp.float32)
    pp = jax.random.normal(k_pp, (batch, pp_input_size), jnp.float32)

    model = BasisDecoderPallas(sb_input_size, pp_input_size, sb_output_size,
                               depth, width, key=k_params)

    sb_out, pp_out = model(sb, pp)
    jax.block_until_ready((sb_out, pp_out))

    # Reference check in plain f32 JAX (same params); bf16 MXU feed keeps us
    # well inside 2e-2 at these scales.
    sb_ref = sb @ model.w_sb_t + model.b_sb
    pp_ref = pp @ model.w_pp_t + model.b_pp
    assert sb_out.shape == (batch, sb_output_size)
    assert pp_out.shape == (batch, 2)
    assert jnp.allclose(sb_out, sb_ref, rtol=2e-2, atol=2e-2)
    assert jnp.allclose(pp_out, pp_ref, rtol=2e-2, atol=2e-2)

    # Also exercise a non-tile-multiple batch to confirm the padding path.
    sb2 = jax.random.normal(jax.random.PRNGKey(7), (batch + 5, sb_input_size), jnp.float32)
    pp2 = jax.random.normal(jax.random.PRNGKey(8), (batch + 5, pp_input_size), jnp.float32)
    sb_out2, pp_out2 = model(sb2, pp2)
    jax.block_until_ready((sb_out2, pp_out2))
    assert jnp.allclose(sb_out2, sb2 @ model.w_sb_t + model.b_sb, rtol=2e-2, atol=2e-2)
    assert jnp.allclose(pp_out2, pp2 @ model.w_pp_t + model.b_pp, rtol=2e-2, atol=2e-2)

    print("KERNEL_OK")
</pallas_src>

<mosaic_0001>
module attributes {stable_mosaic.version = 11 : i64} {
  func.func @_fused_decoder_kernel(%arg0: i32, %arg1: memref<8x32xf32, #tpu.memory_space<vmem>>, %arg2: memref<8x16xf32, #tpu.memory_space<vmem>>, %arg3: memref<32x128xbf16, #tpu.memory_space<vmem>>, %arg4: memref<16x128xbf16, #tpu.memory_space<vmem>>, %arg5: memref<1x128xf32, #tpu.memory_space<vmem>>, %arg6: memref<8x128xf32, #tpu.memory_space<vmem>>) attributes {dimension_semantics = [#tpu.dimension_semantics<parallel>], iteration_bounds = array<i64: 2>, scalar_prefetch = 0 : i64, scratch_operands = 0 : i64, tpu.core_type = #tpu.core_type<tc>, window_params = [{transform_indices = @transform_0, window_bounds = array<i64: 8, 32>}, {transform_indices = @transform_1, window_bounds = array<i64: 8, 16>}, {pipeline_mode = #tpu.pipeline_mode<synchronous>, transform_indices = @transform_2, window_bounds = array<i64: 32, 128>}, {pipeline_mode = #tpu.pipeline_mode<synchronous>, transform_indices = @transform_3, window_bounds = array<i64: 16, 128>}, {pipeline_mode = #tpu.pipeline_mode<synchronous>, transform_indices = @transform_4, window_bounds = array<i64: 1, 128>}, {transform_indices = @transform_5, window_bounds = array<i64: 8, 128>}]} {
    %c0 = arith.constant 0 : index
    %c0_0 = arith.constant 0 : index
    %0 = vector.load %arg1[%c0, %c0_0] : memref<8x32xf32, #tpu.memory_space<vmem>>, vector<8x32xf32>
    %1 = arith.truncf %0 : vector<8x32xf32> to vector<8x32xbf16>
    %c0_1 = arith.constant 0 : index
    %c0_2 = arith.constant 0 : index
    %2 = vector.load %arg2[%c0_1, %c0_2] : memref<8x16xf32, #tpu.memory_space<vmem>>, vector<8x16xf32>
    %3 = arith.truncf %2 : vector<8x16xf32> to vector<8x16xbf16>
    %c0_3 = arith.constant 0 : index
    %c0_4 = arith.constant 0 : index
    %4 = vector.load %arg3[%c0_3, %c0_4] : memref<32x128xbf16, #tpu.memory_space<vmem>>, vector<32x128xbf16>
    %cst = arith.constant dense<0.000000e+00> : vector<8x128xf32>
    %5 = tpu.matmul %1, %4, %cst {dimension_numbers = #tpu.dot_dimension_numbers<[1], [0], [0], [1], [0, 0, 1, 1], [], []>} : vector<8x32xbf16>, vector<32x128xbf16>, vector<8x128xf32> -> vector<8x128xf32>
    %c0_5 = arith.constant 0 : index
    %c0_6 = arith.constant 0 : index
    %6 = vector.load %arg4[%c0_5, %c0_6] : memref<16x128xbf16, #tpu.memory_space<vmem>>, vector<16x128xbf16>
    %cst_7 = arith.constant dense<0.000000e+00> : vector<8x128xf32>
    %7 = tpu.matmul %3, %6, %cst_7 {dimension_numbers = #tpu.dot_dimension_numbers<[1], [0], [0], [1], [0, 0, 1, 1], [], []>} : vector<8x16xbf16>, vector<16x128xbf16>, vector<8x128xf32> -> vector<8x128xf32>
    %8 = arith.addf %5, %7 : vector<8x128xf32>
    %c0_8 = arith.constant 0 : index
    %c0_9 = arith.constant 0 : index
    %9 = vector.load %arg5[%c0_8, %c0_9] : memref<1x128xf32, #tpu.memory_space<vmem>>, vector<1x128xf32>
    %10 = vector.broadcast %9 : vector<1x128xf32> to vector<8x128xf32>
    %11 = arith.addf %8, %10 : vector<8x128xf32>
    %c0_10 = arith.constant 0 : index
    %c0_11 = arith.constant 0 : index
    %12 = vector.load %arg6[%c0_10, %c0_11] : memref<8x128xf32, #tpu.memory_space<vmem>>, vector<8x128xf32>
    tpu.vector_store %arg6[%c0_10, %c0_11], %11 {strides = array<i32>} : memref<8x128xf32, #tpu.memory_space<vmem>>, vector<8x128xf32>,
    return
  }
  func.func @transform_0(%arg0: i32) -> (i32, i32) {
    %c0_i32 = arith.constant 0 : i32
    %c0_i32_0 = arith.constant 0 : i32
    return %arg0, %c0_i32 : i32, i32
  }
  func.func @transform_1(%arg0: i32) -> (i32, i32) {
    %c0_i32 = arith.constant 0 : i32
    %c0_i32_0 = arith.constant 0 : i32
    return %arg0, %c0_i32 : i32, i32
  }
  func.func @transform_2(%arg0: i32) -> (i32, i32) {
    %c0_i32 = arith.constant 0 : i32
    %c0_i32_0 = arith.constant 0 : i32
    %c0_i32_1 = arith.constant 0 : i32
    return %c0_i32, %c0_i32_0 : i32, i32
  }
  func.func @transform_3(%arg0: i32) -> (i32, i32) {
    %c0_i32 = arith.constant 0 : i32
    %c0_i32_0 = arith.constant 0 : i32
    %c0_i32_1 = arith.constant 0 : i32
    return %c0_i32, %c0_i32_0 : i32, i32
  }
  func.func @transform_4(%arg0: i32) -> (i32, i32) {
    %c0_i32 = arith.constant 0 : i32
    %c0_i32_0 = arith.constant 0 : i32
    %c0_i32_1 = arith.constant 0 : i32
    return %c0_i32, %c0_i32_0 : i32, i32
  }
  func.func @transform_5(%arg0: i32) -> (i32, i32) {
    %c0_i32 = arith.constant 0 : i32
    %c0_i32_0 = arith.constant 0 : i32
    return %arg0, %c0_i32 : i32, i32
  }
}

</mosaic_0001>

<llo_original>
// kernel: tpu_custom_call.1
$region0: #{tpu_custom_call.1}
  #allocation0 [shape = 'u32[]', space=smem, size = 0x4, offset = 0x4, fixed_abs, tag = 'smem constant byte address 0x4 - core index']
  #allocation1 [shape = 'u32[144,128]{1,0:T(1,128)}', space=vmem, size = 0x12000, scoped, tag = 'internal scratch']
  %s0 = inlined_call_operand.hbm [shape: f32[16,32], index: 0, kind: input, shape index: {}]
  %s1 = inlined_call_operand.hbm [shape: f32[16,16], index: 1, kind: input, shape index: {}]
  %s2 = inlined_call_operand.hbm [shape: bf16[32,128], index: 2, kind: input, shape index: {}]
  %s3 = inlined_call_operand.hbm [shape: bf16[16,128], index: 3, kind: input, shape index: {}]
  %s4 = inlined_call_operand.vmem [shape: f32[1,128], index: 4, kind: input, shape index: {}]
  %s5 = inlined_call_operand.hbm [shape: f32[16,128], index: 5, kind: output, shape index: {}]
  %s6 = sld [smem:[#allocation0]]
  $region69: #{tpu_custom_call.1} parent=0
    _
  %s8 = ssub.s32 1, %s6
  %s9 = scalar_select 0, %s8, %s6
  $region1: #{tpu_custom_call.1} parent=0
    #allocation2 [shape = 'u8[8192]{0}', space=vmem, size = 0x2000, scoped, tag = 'input window, operand 0']
    #allocation3 [shape = 's32[2]{0}', space=sflag, size = 0x8, scoped, tag = 'scoped memory for tpu_custom_call.1']
    #allocation4 [shape = 's32[2]{0}', space=sflag, size = 0x8, scoped, tag = 'scoped memory for tpu_custom_call.1']
    #allocation5 [shape = 'u8[8192]{0}', space=vmem, size = 0x2000, scoped, tag = 'input window, operand 1']
    #allocation6 [shape = 's32[2]{0}', space=sflag, size = 0x8, scoped, tag = 'scoped memory for tpu_custom_call.1']
    #allocation7 [shape = 'u8[8192]{0}', space=vmem, size = 0x2000, scoped, tag = 'input window, operand 2, single buffered']
    #allocation8 [shape = 'u8[4096]{0}', space=vmem, size = 0x1000, scoped, tag = 'input window, operand 3, single buffered']
    #allocation9 [shape = 's32[1]{0}', space=sflag, size = 0x4, scoped, tag = 'scoped memory for tpu_custom_call.1']
    #allocation10 [shape = 'u8[8192]{0}', space=vmem, size = 0x2000, scoped, tag = 'output window, operand 0']
    %10 = vsyncpa [#allocation3], 0
    %s11 = scalar_lea.sflag [#allocation3], 1
    %12 = vsyncpa %s11, 0
    %13 = vsyncpa [#allocation6], 0
    %s14 = scalar_lea.sflag [#allocation6], 1
    %15 = vsyncpa %s14, 0
    %16 = vsyncpa [#allocation9], 0
    %17 = vsyncpa [#allocation4], 0
    %s18 = scalar_lea.sflag [#allocation4], 1
    %19 = vsyncpa %s18, 0
    loop: start=0, step=1, limit=4
    $region2: #{tpu_custom_call.1} parent=1 // loop_pre_header
      _
    $region3: #{tpu_custom_call.1} parent=1 // loop_header
      %s21 = sphi 0, %s25
      %p22 = scmp.ge.s32.totalorder %s21, 4
      %s31 = sphi 0, %s33
      %s34 = sphi 0, %s31
      %s35 = sphi 0, %s34
      %s51 = sphi 0, %s35
      %s57 = sphi 0, %s59
      %s60 = sphi 0, %s57
      %s61 = sphi 0, %s60
      %s77 = sphi 0, %s61
      %s81 = sphi 0, %s81
      %s83 = sphi 0, %s81
      %s84 = sphi 0, %s83
      %s98 = sphi 0, %s84
      %s102 = sphi 0, %s102
      %s104 = sphi 0, %s102
      %s105 = sphi 0, %s104
      %s119 = sphi 0, %s105
      %s123 = sphi 0, %s123
      %s125 = sphi 0, %s123
      %s126 = sphi 0, %s125
      %s140 = sphi 0, %s126
      %s146 = sphi 0, %s148
      %s149 = sphi 0, %s146
      %s150 = sphi 0, %s149
      %s166 = sphi 0, %s150
    $region4: #{tpu_custom_call.1} parent=1 // loop_header_branch
      %24 = sbr.rel (%p22) target = $region8
    $region5: #{tpu_custom_call.1} parent=1 // loop_body
      %s26 = ssub.s32 %s21, 1
      %s27 = ssub.s32 %s21, 2
      %s28 = sadd.s32 %s21, 1
      %s29 = ssub.s32 %s21, %s28
      %p30 = scmp.eq.s32.totalorder %s29, 0
      %s32 = sadd.s32 %s31, 1
      %s33 = scalar_select %p30, %s31, %s32
      %p36 = pneg %p30
      %p37 = scmp.eq.s32.totalorder %s21, 1
      %p38 = por %p36, %p37
      %p39 = scmp.ne.s32.totalorder %s31, %s34
      %p40 = scmp.eq.s32.totalorder %s21, 0
      %p41 = por %p39, %p40
      %p42 = scmp.ne.s32.totalorder %s31, %s34
      %p43 = scmp.eq.s32.totalorder %s26, 1
      %p44 = por %p42, %p43
      %p45 = scmp.ne.s32.totalorder %s34, %s35
      %p46 = scmp.eq.s32.totalorder %s26, 0
      %p47 = por %p45, %p46
      %p48 = scmp.ne.s32.totalorder %s34, %s35
      %p49 = scmp.eq.s32.totalorder %s27, 1
      %p50 = por %p48, %p49
      %p52 = scmp.ne.s32.totalorder %s35, %s51
      %p53 = scmp.eq.s32.totalorder %s27, 0
      %p54 = por %p52, %p53
      %s55 = ssub.s32 %s21, %s28
      %p56 = scmp.eq.s32.totalorder %s55, 0
      %s58 = sadd.s32 %s57, 1
      %s59 = scalar_select %p56, %s57, %s58
      %p62 = pneg %p56
      %p63 = scmp.eq.s32.totalorder %s21, 1
      %p64 = por %p62, %p63
      %p65 = scmp.ne.s32.totalorder %s57, %s60
      %p66 = scmp.eq.s32.totalorder %s21, 0
      %p67 = por %p65, %p66
      %p68 = scmp.ne.s32.totalorder %s57, %s60
      %p69 = scmp.eq.s32.totalorder %s26, 1
      %p70 = por %p68, %p69
      %p71 = scmp.ne.s32.totalorder %s60, %s61
      %p72 = scmp.eq.s32.totalorder %s26, 0
      %p73 = por %p71, %p72
      %p74 = scmp.ne.s32.totalorder %s60, %s61
      %p75 = scmp.eq.s32.totalorder %s27, 1
      %p76 = por %p74, %p75
      %p78 = scmp.ne.s32.totalorder %s61, %s77
      %p79 = scmp.eq.s32.totalorder %s27, 0
      %p80 = por %p78, %p79
      %s82 = sadd.s32 %s81, 1
      %p85 = scmp.eq.s32.totalorder %s21, 1
      %p86 = scmp.ne.s32.totalorder %s81, %s83
      %p87 = scmp.eq.s32.totalorder %s21, 0
      %p88 = por %p86, %p87
      %p89 = scmp.ne.s32.totalorder %s81, %s83
      %p90 = scmp.eq.s32.totalorder %s26, 1
      %p91 = por %p89, %p90
      %p92 = scmp.ne.s32.totalorder %s83, %s84
      %p93 = scmp.eq.s32.totalorder %s26, 0
      %p94 = por %p92, %p93
      %p95 = scmp.ne.s32.totalorder %s83, %s84
      %p96 = scmp.eq.s32.totalorder %s27, 1
      %p97 = por %p95, %p96
      %p99 = scmp.ne.s32.totalorder %s84, %s98
      %p100 = scmp.eq.s32.totalorder %s27, 0
      %p101 = por %p99, %p100
      %s103 = sadd.s32 %s102, 1
      %p106 = scmp.eq.s32.totalorder %s21, 1
      %p107 = scmp.ne.s32.totalorder %s102, %s104
      %p108 = scmp.eq.s32.totalorder %s21, 0
      %p109 = por %p107, %p108
      %p110 = scmp.ne.s32.totalorder %s102, %s104
      %p111 = scmp.eq.s32.totalorder %s26, 1
      %p112 = por %p110, %p111
      %p113 = scmp.ne.s32.totalorder %s104, %s105
      %p114 = scmp.eq.s32.totalorder %s26, 0
      %p115 = por %p113, %p114
      %p116 = scmp.ne.s32.totalorder %s104, %s105
      %p117 = scmp.eq.s32.totalorder %s27, 1
      %p118 = por %p116, %p117
      %p120 = scmp.ne.s32.totalorder %s105, %s119
      %p121 = scmp.eq.s32.totalorder %s27, 0
      %p122 = por %p120, %p121
      %s124 = sadd.s32 %s123, 1
      %p127 = scmp.eq.s32.totalorder %s21, 1
      %p128 = scmp.ne.s32.totalorder %s123, %s125
      %p129 = scmp.eq.s32.totalorder %s21, 0
      %p130 = por %p128, %p129
      %p131 = scmp.ne.s32.totalorder %s123, %s125
      %p132 = scmp.eq.s32.totalorder %s26, 1
      %p133 = por %p131, %p132
      %p134 = scmp.ne.s32.totalorder %s125, %s126
      %p135 = scmp.eq.s32.totalorder %s26, 0
      %p136 = por %p134, %p135
      %p137 = scmp.ne.s32.totalorder %s125, %s126
      %p138 = scmp.eq.s32.totalorder %s27, 1
      %p139 = por %p137, %p138
      %p141 = scmp.ne.s32.totalorder %s126, %s140
      %p142 = scmp.eq.s32.totalorder %s27, 0
      %p143 = por %p141, %p142
      %s144 = ssub.s32 %s21, %s28
      %p145 = scmp.eq.s32.totalorder %s144, 0
      %s147 = sadd.s32 %s146, 1
      %s148 = scalar_select %p145, %s146, %s147
      %p151 = pneg %p145
      %p152 = scmp.eq.s32.totalorder %s21, 1
      %p153 = por %p151, %p152
      %p154 = scmp.ne.s32.totalorder %s146, %s149
      %p155 = scmp.eq.s32.totalorder %s21, 0
      %p156 = por %p154, %p155
      %p157 = scmp.ne.s32.totalorder %s146, %s149
      %p158 = scmp.eq.s32.totalorder %s26, 1
      %p159 = por %p157, %p158
      %p160 = scmp.ne.s32.totalorder %s149, %s150
      %p161 = scmp.eq.s32.totalorder %s26, 0
      %p162 = por %p160, %p161
      %p163 = scmp.ne.s32.totalorder %s149, %s150
      %p164 = scmp.eq.s32.totalorder %s27, 1
      %p165 = por %p163, %p164
      %p167 = scmp.ne.s32.totalorder %s150, %s166
      %p168 = scmp.eq.s32.totalorder %s27, 0
      %p169 = por %p167, %p168
      %p170 = scmp.le.s32.totalorder 1, %s21
      %p171 = scmp.lt.s32.totalorder %s21, 3
      %p172 = pnand %p170, %p171
      %p173 = pneg %p172
      // Predicated region
      $region9: #{tpu_custom_call.1} parent=5 // pred_check
        _
      $region10: #{tpu_custom_call.1} parent=5 // pred_check_branch
        %175 = sbr.rel (%p172) target = $region12
      $region11: #{tpu_custom_call.1} parent=5 // pred_region
        %s176 = ssub.s32 %s21, 1
        // Predicated region
        $region13: #{tpu_custom_call.1} parent=11 // pred_check
          %p177 = pneg %p94
        $region14: #{tpu_custom_call.1} parent=11 // pred_check_branch
          %179 = sbr.rel (%p177) target = $region16
        $region15: #{tpu_custom_call.1} parent=11 // pred_region
          %s181 = ssub.s32 256, 256
          %182 = vsyncadd [#allocation6], %s181
          %s183 = sshll.u32 [#allocation7], 4
          %s184 = int_to_ptr.vmem [resolvable:$true] %s183
          %189 = dma.hbm_to_vmem [thread:$0]  %s2, 256, %s184, [#allocation6], 64, 64, 4
        $region16: #{tpu_custom_call.1} parent=11 // pred_fallthru
          _
        // Predicated region
        $region17: #{tpu_custom_call.1} parent=11 // pred_check
          %p190 = pneg %p115
        $region18: #{tpu_custom_call.1} parent=11 // pred_check_branch
          %192 = sbr.rel (%p190) target = $region20
        $region19: #{tpu_custom_call.1} parent=11 // pred_region
          %s194 = ssub.s32 128, 128
          %195 = vsyncadd [#allocation9], %s194
          %s196 = sshll.u32 [#allocation8], 4
          %s197 = int_to_ptr.vmem [resolvable:$true] %s196
          %202 = dma.hbm_to_vmem [thread:$0]  %s3, 128, %s197, [#allocation9], 64, 64, 4
        $region20: #{tpu_custom_call.1} parent=11 // pred_fallthru
          _
        // Predicated region
        $region21: #{tpu_custom_call.1} parent=11 // pred_check
          %p203 = pneg %p136
        $region22: #{tpu_custom_call.1} parent=11 // pred_check_branch
          %205 = sbr.rel (%p203) target = $region24
        $region23: #{tpu_custom_call.1} parent=11 // pred_region
          _
        $region24: #{tpu_custom_call.1} parent=11 // pred_fallthru
          _
      $region12: #{tpu_custom_call.1} parent=5 // pred_fallthru
        _
      %p206 = scmp.lt.s32.totalorder %s21, 2
      // Predicated region
      $region25: #{tpu_custom_call.1} parent=5 // pred_check
        %p207 = pneg %p206
      $region26: #{tpu_custom_call.1} parent=5 // pred_check_branch
        %209 = sbr.rel (%p207) target = $region28
      $region27: #{tpu_custom_call.1} parent=5 // pred_region
        // Predicated region
        $region29: #{tpu_custom_call.1} parent=27 // pred_check
          %p210 = pneg %p41
        $region30: #{tpu_custom_call.1} parent=27 // pred_check_branch
          %212 = sbr.rel (%p210) target = $region32
        $region31: #{tpu_custom_call.1} parent=27 // pred_region
          %s213 = sand.u32 %s31, 1
          %s214 = scalar_lea.sflag [#allocation3], %s213
          %s215 = sand.u32 %s31, 1
          %s216 = smul.addr %s215, 8
          %s217 = scalar_lea.vmem [#allocation2], %s216
          %s219 = ssub.s32 128, 128
          %220 = vsyncadd %s214, %s219
          %s221 = smul.addr %s21, 128
          %s222 = scalar_lea.hbm %s0, %s221
          %s224 = sshll.u32 %s217, 4
          %s225 = int_to_ptr.vmem [resolvable:$true] %s224
          %227 = dma.hbm_to_vmem [thread:$0]  %s222, 128, %s225, %s214
        $region32: #{tpu_custom_call.1} parent=27 // pred_fallthru
          _
        // Predicated region
        $region33: #{tpu_custom_call.1} parent=27 // pred_check
          %p228 = pneg %p67
        $region34: #{tpu_custom_call.1} parent=27 // pred_check_branch
          %230 = sbr.rel (%p228) target = $region36
        $region35: #{tpu_custom_call.1} parent=27 // pred_region
          %s231 = sand.u32 %s21, 1
          %s232 = scalar_lea.sflag [#allocation6], %s231
          %s233 = sand.u32 %s57, 1
          %s234 = smul.addr %s233, 8
          %s235 = scalar_lea.vmem [#allocation5], %s234
          %s237 = ssub.s32 128, 128
          %238 = vsyncadd %s232, %s237
          %s239 = smul.addr %s21, 128
          %s240 = scalar_lea.hbm %s1, %s239
          %s242 = sshll.u32 %s235, 4
          %s243 = int_to_ptr.vmem [resolvable:$true] %s242
          %245 = dma.hbm_to_vmem [thread:$0]  %s240, 128, %s243, %s232
        $region36: #{tpu_custom_call.1} parent=27 // pred_fallthru
          _
      $region28: #{tpu_custom_call.1} parent=5 // pred_fallthru
        _
      %p246 = scmp.le.s32.totalorder 1, %s21
      %p247 = scmp.lt.s32.totalorder %s21, 3
      %p248 = pnand %p246, %p247
      %p249 = pneg %p248
      // Predicated region
      $region37: #{tpu_custom_call.1} parent=5 // pred_check
        _
      $region38: #{tpu_custom_call.1} parent=5 // pred_check_branch
        %251 = sbr.rel (%p248) target = $region40
      $region39: #{tpu_custom_call.1} parent=5 // pred_region
        %s252 = ssub.s32 %s21, 1
        %s253 = sand.u32 %s34, 1
        %s254 = scalar_lea.sflag [#allocation3], %s253
        %s255 = sand.u32 %s34, 1
        %s256 = smul.addr %s255, 8
        %s257 = scalar_lea.vmem [#allocation2], %s256
        // Predicated region
        $region41: #{tpu_custom_call.1} parent=39 // pred_check
          %p258 = pneg %p47
        $region42: #{tpu_custom_call.1} parent=39 // pred_check_branch
          %260 = sbr.rel (%p258) target = $region44
        $region43: #{tpu_custom_call.1} parent=39 // pred_region
          %261 = dma.done %s254, 128
        $region44: #{tpu_custom_call.1} parent=39 // pred_fallthru
          _
        %s262 = sand.u32 %s26, 1
        %s263 = scalar_lea.sflag [#allocation6], %s262
        %s264 = sand.u32 %s60, 1
        %s265 = smul.addr %s264, 8
        %s266 = scalar_lea.vmem [#allocation5], %s265
        // Predicated region
        $region45: #{tpu_custom_call.1} parent=39 // pred_check
          %p267 = pneg %p73
        $region46: #{tpu_custom_call.1} parent=39 // pred_check_branch
          %269 = sbr.rel (%p267) target = $region48
        $region47: #{tpu_custom_call.1} parent=39 // pred_region
          %270 = dma.done %s263, 128
        $region48: #{tpu_custom_call.1} parent=39 // pred_fallthru
          _
        // Predicated region
        $region49: #{tpu_custom_call.1} parent=39 // pred_check
          %p271 = pneg %p94
        $region50: #{tpu_custom_call.1} parent=39 // pred_check_branch
          %273 = sbr.rel (%p271) target = $region52
        $region51: #{tpu_custom_call.1} parent=39 // pred_region
          %274 = dma.done [#allocation6], 256
        $region52: #{tpu_custom_call.1} parent=39 // pred_fallthru
          _
        // Predicated region
        $region53: #{tpu_custom_call.1} parent=39 // pred_check
          %p275 = pneg %p115
        $region54: #{tpu_custom_call.1} parent=39 // pred_check_branch
          %277 = sbr.rel (%p275) target = $region56
        $region55: #{tpu_custom_call.1} parent=39 // pred_region
          %278 = dma.done [#allocation9], 128
        $region56: #{tpu_custom_call.1} parent=39 // pred_fallthru
          _
        %s279 = sand.u32 %s34, 1
        %s280 = scalar_lea.sflag [#allocation3], %s279
        %s281 = sand.u32 %s34, 1
        %s282 = smul.addr %s281, 8
        %s283 = scalar_lea.vmem [#allocation2], %s282
        %p284 = pneg %p47
        %p285 = pneg %p44
        %s286 = sand.u32 %s26, 1
        %s287 = scalar_lea.sflag [#allocation6], %s286
        %s288 = sand.u32 %s60, 1
        %s289 = smul.addr %s288, 8
        %s290 = scalar_lea.vmem [#allocation5], %s289
        %p291 = pneg %p73
        %p292 = pneg %p70
        %p293 = pneg %p94
        %p294 = pneg %p91
        %p295 = pneg %p115
        %p296 = pneg %p112
        %p297 = pneg %p136
        %p298 = pneg %p133
        %p299 = pneg %p162
        %p300 = pneg %p159
        %s301 = sand.u32 %s149, 1
        %s302 = scalar_lea.sflag [#allocation4], %s301
        %s303 = sand.u32 %s149, 1
        %s304 = smul.addr %s303, 8
        %s305 = scalar_lea.vmem [#allocation10], %s304
        %v307 = vld [vmem:[%s257] sm:$0xff]
        %v308 = vpack.c.bf16 %v307, %v307
        %v309 = vld [vmem:[%s266] sm:$0xff]
        %v310 = vpack.c.bf16 %v309, %v309
        %v311 = vld [vmem:[#allocation7] sm:$0xf]
        %v312 = vld [vmem:[#allocation7 + $0x4] sm:$0xf]
        %v313 = vld [vmem:[#allocation7 + $0x8] sm:$0xf]
        %v314 = vld [vmem:[#allocation7 + $0xc] sm:$0xf]
        %v315 = vld [vmem:[#allocation8] sm:$0xf]
        %v316 = vld [vmem:[#allocation8 + $0x4] sm:$0xf]
        %v319 = vunpack.c.l.b16 %v315
        %v320 = vunpack.c.l.b16 %v316
        %v321 = vpack.c.b16 %v320, %v319
        %vm323 = vcmask 130048
        %v325 = vsel %vm323, %v310, 0
        %327 = vmatprep.subr.bf16.mxu0 0
        %328 = vmatpush1.bf16.msra.mxu0 0
        %329 = vmatprep.subr.bf16.mxu0 0
        %330 = vmatpush1.bf16.msra.mxu0 0
        %331 = vmatprep.subr.bf16.mxu0 0
        %332 = vmatpush1.bf16.msra.mxu0 0
        %333 = vmatprep.subr.bf16.mxu0 0
        %334 = vmatpush1.bf16.msra.mxu0 0
        %335 = vmatprep.subr.bf16.mxu0 0
        %336 = vmatpush1.bf16.msra.mxu0 0
        %337 = vmatprep.subr.bf16.mxu0 0
        %338 = vmatpush1.bf16.msra.mxu0 0
        %339 = vmatprep.subr.bf16.mxu0 0
        %340 = vmatpush1.bf16.msra.mxu0 0
        %341 = vmatprep.subr.bf16.mxu0 0
        %342 = vmatpush1.bf16.msra.mxu0 %v321
        %343 = vmatprep.subr.bf16.mxu0 0
        %344 = vmatpush2.bf16.msra.mxu0 0
        %345 = vmatprep.subr.bf16.mxu0 0
        %346 = vmatpush2.bf16.msra.mxu0 0
        %347 = vmatprep.subr.bf16.mxu0 0
        %348 = vmatpush2.bf16.msra.mxu0 0
        %349 = vmatprep.subr.bf16.mxu0 0
        %350 = vmatpush2.bf16.msra.mxu0 0
        %351 = vmatprep.subr.bf16.mxu0 0
        %352 = vmatpush2.bf16.msra.mxu0 0
        %353 = vmatprep.subr.bf16.mxu0 0
        %354 = vmatpush2.bf16.msra.mxu0 0
        %355 = vmatprep.subr.bf16.mxu0 0
        %356 = vmatpush2.bf16.msra.mxu0 0
        %357 = vmatprep.subr.bf16.mxu0 0
        %358 = vmatpush2.bf16.msra.mxu0 0
        %359 = vmatprep.mubr.bf16.mxu0 0
        %360 = vmatmul.mubr.bf16.gmra.mxu0 %v325
        %v361 = vpop.f32.mrf.mxu0
        %v362 = vadd.f32 0.0, %v361
        %v363 = vpop.f32.mrf.mxu0
        %v364 = vpop.f32.mrf.mxu0
        %v365 = vpop.f32.mrf.mxu0
        %366 = vdwg.mxu0
        %v371 = vunpack.c.l.b16 %v311
        %v372 = vunpack.c.l.b16 %v312
        %v373 = vunpack.c.l.b16 %v313
        %v374 = vunpack.c.l.b16 %v314
        %v375 = vpack.c.b16 %v372, %v371
        %v376 = vpack.c.b16 %v374, %v373
        %vm379 = vcmask 261120
        %v381 = vsel %vm379, %v308, 0
        %383 = vmatprep.subr.bf16.mxu0 0
        %384 = vmatpush1.bf16.msra.mxu0 0
        %385 = vmatprep.subr.bf16.mxu0 0
        %386 = vmatpush1.bf16.msra.mxu0 0
        %387 = vmatprep.subr.bf16.mxu0 0
        %388 = vmatpush1.bf16.msra.mxu0 0
        %389 = vmatprep.subr.bf16.mxu0 0
        %390 = vmatpush1.bf16.msra.mxu0 0
        %391 = vmatprep.subr.bf16.mxu0 0
        %392 = vmatpush1.bf16.msra.mxu0 0
        %393 = vmatprep.subr.bf16.mxu0 0
        %394 = vmatpush1.bf16.msra.mxu0 0
        %395 = vmatprep.subr.bf16.mxu0 0
        %396 = vmatpush1.bf16.msra.mxu0 %v376
        %397 = vmatprep.subr.bf16.mxu0 0
        %398 = vmatpush1.bf16.msra.mxu0 %v375
        %399 = vmatprep.subr.bf16.mxu0 0
        %400 = vmatpush2.bf16.msra.mxu0 0
        %401 = vmatprep.subr.bf16.mxu0 0
        %402 = vmatpush2.bf16.msra.mxu0 0
        %403 = vmatprep.subr.bf16.mxu0 0
        %404 = vmatpush2.bf16.msra.mxu0 0
        %405 = vmatprep.subr.bf16.mxu0 0
        %406 = vmatpush2.bf16.msra.mxu0 0
        %407 = vmatprep.subr.bf16.mxu0 0
        %408 = vmatpush2.bf16.msra.mxu0 0
        %409 = vmatprep.subr.bf16.mxu0 0
        %410 = vmatpush2.bf16.msra.mxu0 0
        %411 = vmatprep.subr.bf16.mxu0 0
        %412 = vmatpush2.bf16.msra.mxu0 0
        %413 = vmatprep.subr.bf16.mxu0 0
        %414 = vmatpush2.bf16.msra.mxu0 0
        %415 = vmatprep.mubr.bf16.mxu0 0
        %416 = vmatmul.mubr.bf16.gmra.mxu0 %v381
        %v417 = vpop.f32.mrf.mxu0
        %v418 = vadd.f32 %v362, %v417
        %v419 = vpop.f32.mrf.mxu0
        %v420 = vpop.f32.mrf.mxu0
        %v421 = vpop.f32.mrf.mxu0
        %422 = vdwg.mxu0
        %v423 = vld [vmem:[%s4] sm:$0x1]
        %v425 = vlaneseq
        %v426 = vshrl.u32 %v425, 7
        %v427 = vsub.s32 0, %v426
        %v428 = vrot.slane %v423, %v427
        %v430 = vadd.f32 %v418, %v428
        %431 = vst [vmem:[%s305] sm:$0xff] %v430
        %s432 = sand.u32 %s149, 1
        %s433 = scalar_lea.sflag [#allocation4], %s432
        %s434 = sand.u32 %s149, 1
        %s435 = smul.addr %s434, 8
        %s436 = scalar_lea.vmem [#allocation10], %s435
        // Predicated region
        $region57: #{tpu_custom_call.1} parent=39 // pred_check
          %p437 = pneg %p159
        $region58: #{tpu_custom_call.1} parent=39 // pred_check_branch
          %439 = sbr.rel (%p437) target = $region60
        $region59: #{tpu_custom_call.1} parent=39 // pred_region
          %s441 = ssub.s32 128, 128
          %442 = vsyncadd %s433, %s441
          %s443 = smul.addr %s26, 128
          %s444 = scalar_lea.hbm %s5, %s443
          %s446 = sshll.u32 %s436, 4
          %s447 = int_to_ptr.vmem [resolvable:$true] %s446
          %449 = dma.vmem_to_hbm [thread:$0]  %s447, 128, %s444, %s433
        $region60: #{tpu_custom_call.1} parent=39 // pred_fallthru
          _
      $region40: #{tpu_custom_call.1} parent=5 // pred_fallthru
        _
      %p450 = scmp.le.s32.totalorder 2, %s21
      // Predicated region
      $region61: #{tpu_custom_call.1} parent=5 // pred_check
        %p451 = pneg %p450
      $region62: #{tpu_custom_call.1} parent=5 // pred_check_branch
        %453 = sbr.rel (%p451) target = $region64
      $region63: #{tpu_custom_call.1} parent=5 // pred_region
        %s454 = ssub.s32 %s21, 2
        // Predicated region
        $region65: #{tpu_custom_call.1} parent=63 // pred_check
          %p455 = pneg %p165
        $region66: #{tpu_custom_call.1} parent=63 // pred_check_branch
          %457 = sbr.rel (%p455) target = $region68
        $region67: #{tpu_custom_call.1} parent=63 // pred_region
          %s458 = sand.u32 %s150, 1
          %s459 = scalar_lea.sflag [#allocation4], %s458
          %s460 = sand.u32 %s150, 1
          %s461 = smul.addr %s460, 8
          %s462 = scalar_lea.vmem [#allocation10], %s461
          %463 = dma.done %s459, 128
        $region68: #{tpu_custom_call.1} parent=63 // pred_fallthru
          _
      $region64: #{tpu_custom_call.1} parent=5 // pred_fallthru
        _
    $region6: #{tpu_custom_call.1} parent=1 // loop_footer
      %s25 = sadd.s32 1, %s21
    $region7: #{tpu_custom_call.1} parent=1 // loop_footer_branch
      %20 = sbr.rel target = $region3
    $region8: #{tpu_custom_call.1} parent=1 // loop_exit
      _
    %464 = vsyncpa [#allocation3], 1
    %s465 = scalar_lea.sflag [#allocation3], 1
    %466 = vsyncpa %s465, 1
    %467 = vsyncpa [#allocation6], 1
    %s468 = scalar_lea.sflag [#allocation6], 1
    %469 = vsyncpa %s468, 1
    %470 = vsyncpa [#allocation9], 1
    %471 = vsyncpa [#allocation4], 1
    %s472 = scalar_lea.sflag [#allocation4], 1
    %473 = vsyncpa %s472, 1

</llo_original>
